<compile_context>
chip_gen: v6e
topology: v6e:2x2x1
jax: 0.10.0
libtpu: 0.0.40
codegen_flags: <defaults>
</compile_context>

<pallas_src>
import functools

import numpy as np
import jax
import jax.numpy as jnp
from jax import lax
from jax.experimental import pallas as pl
from jax.experimental.pallas import tpu as pltpu

EPS = 1e-5
NEG_BIG = -1e30                        # bias of lane-padded logit columns -> softmax weight 0
VMEM_LIMIT_BYTES = 28 * 1024 * 1024    # pipeline headroom against v7x's 64 MiB VMEM
V_RESIDENT_BUDGET = 12 * 1024 * 1024   # per-buffer cap for the grid-invariant v block


def _cparams(semantics):
    return pltpu.CompilerParams(dimension_semantics=semantics,
                                vmem_limit_bytes=VMEM_LIMIT_BYTES)


# --------------------------------------------------------------------------
# Fused Linear: y = relu?((sum_j (x_j*scale_j+shift_j) @ W_j) + b)  [+ per-tile BN stats]
# --------------------------------------------------------------------------

def _fused_linear_kernel(*refs, n_in, relu, with_stats, n_valid):
    ws = refs[3 * n_in:4 * n_in]
    b_ref = refs[4 * n_in]
    y_ref = refs[4 * n_in + 1]
    stats_ref = refs[4 * n_in + 2] if with_stats else None

    y = None
    for j in range(n_in):
        x_ref, s_ref, t_ref = refs[3 * j], refs[3 * j + 1], refs[3 * j + 2]
        # previous layer's (deferred) BN affine, fused into this layer's prologue
        h = x_ref[...].astype(jnp.float32) * s_ref[...] + t_ref[...]
        part = jnp.dot(h.astype(jnp.bfloat16), ws[j][...].astype(jnp.bfloat16),
                       preferred_element_type=jnp.float32)
        y = part if y is None else y + part
    y = y + b_ref[...]
    if relu:
        y = jnp.maximum(y, 0.0)
    y_ref[...] = y.astype(y_ref.dtype)

    if with_stats:
        # Per-tile partial sums (masked on padded tail rows) -> (1, 2, cout) output.
        # NOTE: E[x^2]-E[x]^2 in f32; activations here are O(1) post-ReLU values.
        tm = y.shape[0]
        row = pl.program_id(0) * tm + lax.broadcasted_iota(jnp.int32, (tm, 1), 0)
        ym = jnp.where(row < n_valid, y, 0.0)
        stats_ref[...] = jnp.concatenate(
            [jnp.sum(ym, axis=0, keepdims=True),
             jnp.sum(ym * ym, axis=0, keepdims=True)], axis=0)[None]


def fused_linear(xs, scales, shifts, ws, b, *, relu, with_stats,
                 n_valid=0, tm=512, out_dtype=jnp.bfloat16):
    n_pad = xs[0].shape[0]
    assert n_pad % tm == 0
    n_in = len(xs)
    cout = ws[0].shape[1]
    ntiles = n_pad // tm

    in_specs, args = [], []
    for x, s, t in zip(xs, scales, shifts):
        cin = x.shape[1]
        in_specs += [pl.BlockSpec((tm, cin), lambda i: (i, 0)),
                     pl.BlockSpec((1, cin), lambda i: (0, 0)),
                     pl.BlockSpec((1, cin), lambda i: (0, 0))]
        args += [x, s.reshape(1, cin).astype(jnp.float32),
                 t.reshape(1, cin).astype(jnp.float32)]
    for w in ws:
        in_specs.append(pl.BlockSpec(w.shape, lambda i: (0, 0)))
        args.append(w)
    in_specs.append(pl.BlockSpec((1, cout), lambda i: (0, 0)))
    args.append(b.reshape(1, cout).astype(jnp.float32))

    kernel = functools.partial(_fused_linear_kernel, n_in=n_in, relu=relu,
                               with_stats=with_stats, n_valid=n_valid)
    if with_stats:
        out_shape = (jax.ShapeDtypeStruct((n_pad, cout), out_dtype),
                     jax.ShapeDtypeStruct((ntiles, 2, cout), jnp.float32))
        out_specs = (pl.BlockSpec((tm, cout), lambda i: (i, 0)),
                     pl.BlockSpec((1, 2, cout), lambda i: (i, 0, 0)))
    else:
        out_shape = jax.ShapeDtypeStruct((n_pad, cout), out_dtype)
        out_specs = pl.BlockSpec((tm, cout), lambda i: (i, 0))
    return pl.pallas_call(kernel, out_shape=out_shape, grid=(ntiles,),
                          in_specs=in_specs, out_specs=out_specs,
                          compiler_params=_cparams(("parallel",)))(*args)


def _bn_affine(stats_partial, count, gamma, beta):
    stats = jnp.sum(stats_partial, axis=0)                    # (2, C) f32
    mean = stats[0] / count
    var = jnp.maximum(stats[1] / count - mean * mean, 0.0)    # biased var (training BN)
    scale = gamma * lax.rsqrt(var + EPS)
    shift = beta - mean * scale
    return scale, shift


# --------------------------------------------------------------------------
# GCU first linear: produces u = x@(Wa-Wb)+b1 and v = x@Wb as two full-width arrays
# --------------------------------------------------------------------------

def _uv_kernel(x_ref, s_ref, t_ref, w_ref, b_ref, u_ref, v_ref):
    h = x_ref[...].astype(jnp.float32) * s_ref[...] + t_ref[...]
    y = jnp.dot(h.astype(jnp.bfloat16), w_ref[...].astype(jnp.bfloat16),
                preferred_element_type=jnp.float32) + b_ref[...]
    cmid = u_ref.shape[1]
    u_ref[...] = y[:, :cmid]
    v_ref[...] = y[:, cmid:]


def uv_linear(x, scale, shift, wc, bc, *, tm):
    n_pad, cin = x.shape
    two_cmid = wc.shape[1]
    cmid = two_cmid // 2
    assert n_pad % tm == 0
    return pl.pallas_call(
        _uv_kernel,
        out_shape=(jax.ShapeDtypeStruct((n_pad, cmid), jnp.float32),
                   jax.ShapeDtypeStruct((n_pad, cmid), jnp.float32)),
        grid=(n_pad // tm,),
        in_specs=[pl.BlockSpec((tm, cin), lambda i: (i, 0)),
                  pl.BlockSpec((1, cin), lambda i: (0, 0)),
                  pl.BlockSpec((1, cin), lambda i: (0, 0)),
                  pl.BlockSpec((cin, two_cmid), lambda i: (0, 0)),
                  pl.BlockSpec((1, two_cmid), lambda i: (0, 0))],
        out_specs=(pl.BlockSpec((tm, cmid), lambda i: (i, 0)),
                   pl.BlockSpec((tm, cmid), lambda i: (i, 0))),
        compiler_params=_cparams(("parallel",)),
    )(x, scale.reshape(1, cin).astype(jnp.float32),
      shift.reshape(1, cin).astype(jnp.float32),
      wc, bc.reshape(1, two_cmid).astype(jnp.float32))


# --------------------------------------------------------------------------
# In-kernel neighbor-gather support probe (lowering + numeric check, cached per shape)
# --------------------------------------------------------------------------

@functools.lru_cache(maxsize=None)
def _gather_in_kernel_ok(n_rows, cols, tm):
    try:
        def k(v_ref, i_ref, o_ref):
            o_ref[...] = jnp.take(v_ref[...], i_ref[...][:, 0], axis=0)

        v = (jnp.arange(n_rows * cols, dtype=jnp.float32).reshape(n_rows, cols)
             * 0.001)
        idx = (jnp.arange(tm, dtype=jnp.int32) * 7919) % n_rows
        idx2 = jnp.stack([idx, idx], axis=1)
        out = pl.pallas_call(
            k, out_shape=jax.ShapeDtypeStruct((tm, cols), jnp.float32),
            grid=(1,),
            in_specs=[pl.BlockSpec((n_rows, cols), lambda i: (0, 0)),
                      pl.BlockSpec((tm, 2), lambda i: (0, 0))],
            out_specs=pl.BlockSpec((tm, cols), lambda i: (0, 0)),
            compiler_params=_cparams(("arbitrary",)))(v, idx2)
        ref = jnp.take(v, idx, axis=0)
        return bool(jnp.all(out == ref))
    except Exception:
        return False


# --------------------------------------------------------------------------
# EdgeConv kernels (fixed-max-degree dense neighbor table)
# --------------------------------------------------------------------------

def _edge_in_specs(n_pad, cmid, dmax, tm, gather):
    u_spec = pl.BlockSpec((tm, cmid), lambda i: (i, 0))
    mask_spec = pl.BlockSpec((tm, dmax), lambda i: (i, 0))
    if gather:
        return [u_spec,
                pl.BlockSpec((n_pad, cmid), lambda i: (0, 0)),   # grid-invariant v
                pl.BlockSpec((tm, dmax), lambda i: (i, 0)),      # neighbor indices
                mask_spec]
    return [u_spec,
            pl.BlockSpec((dmax, tm, cmid), lambda i: (0, i, 0)),  # pre-gathered v_nbr
            mask_spec]


def _edge_stats_kernel(*refs, dmax, gather):
    """Per-tile BN statistics of relu(u_i + v_j) over valid edges (EdgeConv layer 1)."""
    if gather:
        u_ref, v_ref, idx_ref, m_ref, stats_ref = refs
    else:
        u_ref, vn_ref, m_ref, stats_ref = refs
    u = u_ref[...]
    mask = m_ref[...]
    if gather:
        v_all = v_ref[...]
        idx = idx_ref[...]
    acc_s = jnp.zeros_like(u)
    acc_q = jnp.zeros_like(u)
    # TODO(synk): switch to lax.fori_loop(..., unroll=k) for meshes with dmax >= 8
    for d in range(dmax):
        vj = jnp.take(v_all, idx[:, d], axis=0) if gather else vn_ref[d]
        z = jnp.maximum(u + vj, 0.0)
        m = mask[:, d:d + 1] > 0.5
        zm = jnp.where(m, z, 0.0)
        acc_s = acc_s + zm
        acc_q = acc_q + zm * zm
    # single XLU reduction per tile (hoisted out of the degree loop)
    stats_ref[...] = jnp.concatenate(
        [jnp.sum(acc_s, axis=0, keepdims=True),
         jnp.sum(acc_q, axis=0, keepdims=True)], axis=0)[None]


def edge_layer1_stats(edge_args, *, dmax, tm, gather):
    u = edge_args[0]
    n_pad, cmid = u.shape
    ntiles = n_pad // tm
    return pl.pallas_call(
        functools.partial(_edge_stats_kernel, dmax=dmax, gather=gather),
        out_shape=jax.ShapeDtypeStruct((ntiles, 2, cmid), jnp.float32),
        grid=(ntiles,),
        in_specs=_edge_in_specs(n_pad, cmid, dmax, tm, gather),
        out_specs=pl.BlockSpec((1, 2, cmid), lambda i: (i, 0, 0)),
        compiler_params=_cparams(("parallel",)),
    )(*edge_args)


def _edge_conv_kernel(*refs, dmax, gather, need_min):
    """EdgeConv layer 2 + masked max(/min) aggregation + per-tile layer-2 BN stats."""
    if gather:
        u_ref, v_ref, idx_ref, m_ref, w2_ref, b2_ref = refs[:6]
        out_refs = refs[6:]
    else:
        u_ref, vn_ref, m_ref, w2_ref, b2_ref = refs[:5]
        out_refs = refs[5:]
    if need_min:
        mx_ref, mn_ref, stats_ref = out_refs
    else:
        mx_ref, stats_ref = out_refs

    u = u_ref[...]
    mask = m_ref[...]
    w2 = w2_ref[...].astype(jnp.bfloat16)
    b2 = b2_ref[...]
    tm = u.shape[0]
    cout = b2.shape[-1]
    if gather:
        v_all = v_ref[...]
        idx = idx_ref[...]

    mx = jnp.full((tm, cout), -jnp.inf, jnp.float32)
    mn = jnp.full((tm, cout), jnp.inf, jnp.float32) if need_min else None
    acc_s = jnp.zeros((tm, cout), jnp.float32)
    acc_q = jnp.zeros((tm, cout), jnp.float32)
    # TODO(synk): fori_loop unroll + 2-degree batched matmul would help v5e at large dmax
    for d in range(dmax):
        vj = jnp.take(v_all, idx[:, d], axis=0) if gather else vn_ref[d]
        z1 = jnp.maximum(u + vj, 0.0)                        # layer 1 (BN1 folded into w2/b2)
        z2 = jnp.dot(z1.astype(jnp.bfloat16), w2,
                     preferred_element_type=jnp.float32) + b2
        z2 = jnp.maximum(z2, 0.0)                            # layer 2 ReLU
        m = mask[:, d:d + 1] > 0.5
        mx = jnp.where(m, jnp.maximum(mx, z2), mx)
        if need_min:
            mn = jnp.where(m, jnp.minimum(mn, z2), mn)
        zm = jnp.where(m, z2, 0.0)
        acc_s = acc_s + zm
        acc_q = acc_q + zm * zm
    # rows with no valid neighbor (padding) -> 0, so +/-inf never reaches a matmul
    has_nbr = jnp.sum(mask, axis=1, keepdims=True) > 0.5
    mx_ref[...] = jnp.where(has_nbr, mx, 0.0).astype(mx_ref.dtype)
    if need_min:
        mn_ref[...] = jnp.where(has_nbr, mn, 0.0).astype(mn_ref.dtype)
    stats_ref[...] = jnp.concatenate(
        [jnp.sum(acc_s, axis=0, keepdims=True),
         jnp.sum(acc_q, axis=0, keepdims=True)], axis=0)[None]


def edge_conv_aggregate(edge_args, w2, b2, *, dmax, tm, gather, need_min, out_dtype):
    u = edge_args[0]
    n_pad, cmid = u.shape
    cout = w2.shape[1]
    ntiles = n_pad // tm
    in_specs = _edge_in_specs(n_pad, cmid, dmax, tm, gather)
    in_specs += [pl.BlockSpec((cmid, cout), lambda i: (0, 0)),
                 pl.BlockSpec((1, cout), lambda i: (0, 0))]
    out_shape = [jax.ShapeDtypeStruct((n_pad, cout), out_dtype)]
    out_specs = [pl.BlockSpec((tm, cout), lambda i: (i, 0))]
    if need_min:
        out_shape.append(jax.ShapeDtypeStruct((n_pad, cout), out_dtype))
        out_specs.append(pl.BlockSpec((tm, cout), lambda i: (i, 0)))
    out_shape.append(jax.ShapeDtypeStruct((ntiles, 2, cout), jnp.float32))
    out_specs.append(pl.BlockSpec((1, 2, cout), lambda i: (i, 0, 0)))
    return pl.pallas_call(
        functools.partial(_edge_conv_kernel, dmax=dmax, gather=gather,
                          need_min=need_min),
        out_shape=tuple(out_shape), grid=(ntiles,),
        in_specs=in_specs, out_specs=tuple(out_specs),
        compiler_params=_cparams(("parallel",)),
    )(*edge_args, w2, b2.reshape(1, cout).astype(jnp.float32))


def _gcu_edge_path(u, v, nbr_nm, mask, e_count, w2, b2, g1, be1, *,
                   tm, gather, need_min):
    dmax = nbr_nm.shape[1]
    if gather:
        edge_args = (u, v, nbr_nm, mask)
    else:
        # Fallback: one XLA pre-gather (read by both edge passes).
        v_nbr = jnp.take(v, jnp.transpose(nbr_nm), axis=0)      # (dmax, n_pad, cmid)
        edge_args = (u, v_nbr, mask)

    # Pass A: layer-1 BN statistics over valid edges.
    stats1 = edge_layer1_stats(edge_args, dmax=dmax, tm=tm, gather=gather)
    s1, t1 = _bn_affine(stats1, e_count, g1, be1)
    # Fold the layer-1 BN affine into the layer-2 weights (tiny, done once in XLA).
    w2f = (s1[:, None] * w2).astype(jnp.bfloat16)
    b2f = t1 @ w2 + b2

    out_dtype = jnp.float32 if need_min else jnp.bfloat16
    # Pass B: layer 2 + masked max(/min) aggregation + layer-2 BN stats.
    return edge_conv_aggregate(edge_args, w2f, b2f, dmax=dmax, tm=tm,
                               gather=gather, need_min=need_min, out_dtype=out_dtype)


def gcu_tpl_forward(x, x_scale, x_shift, nbr_nm, mask, e_count, layers, *,
                    tm_mlp, tm_edge):
    """EdgeConv(nn=MLP([2*cin, cmid, cout]), aggr='max') on the tpl graph.

    Returns (features_bf16, pending_scale, pending_shift): the output BN2 affine is
    deferred into the consumer's fused prologue whenever all gammas are >= 0.
    """
    (w1, b1, g1, be1), (w2, b2, g2, be2) = layers
    n_pad, cin = x.shape
    cmid = w1.shape[1]

    # Algebraic split: [x_i, x_j-x_i] @ W1 = x_i @ (Wa - Wb) + x_j @ Wb  (b1 folded in u)
    w_a, w_b = w1[:cin], w1[cin:]
    wc = jnp.concatenate([w_a - w_b, w_b], axis=1).astype(jnp.bfloat16)
    bc = jnp.concatenate([b1, jnp.zeros_like(b1)], axis=0)
    u, v = uv_linear(x, x_scale, x_shift, wc, bc, tm=tm_mlp)

    # Host-side checks (module is driven eagerly; params are concrete).
    need_min = bool(np.any(np.asarray(g2) < 0.0))
    fits = 2 * n_pad * cmid * 4 <= V_RESIDENT_BUDGET
    gather = fits and _gather_in_kernel_ok(int(n_pad), int(cmid), int(tm_edge))

    kwargs = dict(tm=tm_edge, need_min=need_min)
    if gather:
        try:
            res = _gcu_edge_path(u, v, nbr_nm, mask, e_count, w2, b2, g1, be1,
                                 gather=True, **kwargs)
        except Exception:
            res = _gcu_edge_path(u, v, nbr_nm, mask, e_count, w2, b2, g1, be1,
                                 gather=False, **kwargs)
    else:
        res = _gcu_edge_path(u, v, nbr_nm, mask, e_count, w2, b2, g1, be1,
                             gather=False, **kwargs)

    if need_min:
        # BN after max, exactly: per-channel affine is monotone -> select max/min by sign.
        mx, mn, stats2 = res
        s2, t2 = _bn_affine(stats2, e_count, g2, be2)
        y = jnp.where(s2 >= 0.0, s2 * mx + t2, s2 * mn + t2).astype(jnp.bfloat16)
        return y, jnp.ones_like(s2), jnp.zeros_like(t2)
    mx, stats2 = res
    s2, t2 = _bn_affine(stats2, e_count, g2, be2)
    return mx, s2, t2          # BN2 affine deferred into the consumer's prologue


# --------------------------------------------------------------------------
# Tail: softmax over parts + per-batch score normalization + weighted_pos pool
# (lane-dense: part dimension padded to 128; padded columns carry logit -1e30)
# --------------------------------------------------------------------------

def _tail_kernel(logit_ref, pos_ref, sw_ref, score_ref, wpos_ref):
    lg = logit_ref[0]                                       # (V, Kp) f32
    m = jnp.max(lg, axis=1, keepdims=True)
    e = jnp.exp(lg - m)
    sw = e / jnp.sum(e, axis=1, keepdims=True)              # softmax over parts
    denom = jnp.sum(sw, axis=0, keepdims=True)              # scatter_sum over this batch
    denom = jnp.where(denom > 0.0, denom, 1.0)              # padded part columns: 0/0 guard
    score = sw / denom
    sw_ref[0] = sw
    score_ref[0] = score
    wpos_ref[0] = lax.dot_general(                          # (Kp, 3) = score_b^T @ pos_b
        score, pos_ref[0], (((0,), (0,)), ((), ())),
        preferred_element_type=jnp.float32)


def softmax_score_pool(logits, pos, B, V):
    N, Kp = logits.shape
    C = pos.shape[1]
    sw, score, wpos = pl.pallas_call(
        _tail_kernel,
        out_shape=(jax.ShapeDtypeStruct((B, V, Kp), jnp.float32),
                   jax.ShapeDtypeStruct((B, V, Kp), jnp.float32),
                   jax.ShapeDtypeStruct((B, Kp, C), jnp.float32)),
        grid=(B,),
        in_specs=[pl.BlockSpec((1, V, Kp), lambda b: (b, 0, 0)),
                  pl.BlockSpec((1, V, C), lambda b: (b, 0, 0))],
        out_specs=(pl.BlockSpec((1, V, Kp), lambda b: (b, 0, 0)),
                   pl.BlockSpec((1, V, Kp), lambda b: (b, 0, 0)),
                   pl.BlockSpec((1, Kp, C), lambda b: (b, 0, 0))),
        compiler_params=_cparams(("parallel",)),
    )(logits.reshape(B, V, Kp), pos.reshape(B, V, C))
    return sw.reshape(N, Kp), score.reshape(N, Kp), wpos


# --------------------------------------------------------------------------
# HandlePredictorSWTpl forward
# --------------------------------------------------------------------------

def handle_predictor_forward(params, x, nbr_nm, nbr_mask, e_count, *, B, V,
                             tm_mlp=512, tm_edge=256):
    N, in_dim = x.shape
    assert N == B * V and tm_mlp % tm_edge == 0
    n_pad = max(tm_mlp, ((N + tm_mlp - 1) // tm_mlp) * tm_mlp)
    x_pad = jnp.pad(x, ((0, n_pad - N), (0, 0)))
    nbr_p = jnp.pad(nbr_nm, ((0, n_pad - N), (0, 0)))
    mask_p = jnp.pad(nbr_mask, ((0, n_pad - N), (0, 0)))
    pos = x[:, :3]

    sc0 = jnp.ones((in_dim,), jnp.float32)
    sh0 = jnp.zeros((in_dim,), jnp.float32)
    x1, sc1, sh1 = gcu_tpl_forward(x_pad, sc0, sh0, nbr_p, mask_p, e_count,
                                   params["gcu1"], tm_mlp=tm_mlp, tm_edge=tm_edge)
    x2, sc2, sh2 = gcu_tpl_forward(x1, sc1, sh1, nbr_p, mask_p, e_count,
                                   params["gcu2"], tm_mlp=tm_mlp, tm_edge=tm_edge)
    x3, sc3, sh3 = gcu_tpl_forward(x2, sc2, sh2, nbr_p, mask_p, e_count,
                                   params["gcu3"], tm_mlp=tm_mlp, tm_edge=tm_edge)

    # mlp_glb (448->256): split-W multi-input matmul -> no (n_pad, 448) concat is built.
    (wg, bg, gg, beg), = params["mlp_glb"]
    c1, c2 = x1.shape[1], x2.shape[1]
    wgs = [wg[:c1].astype(jnp.bfloat16), wg[c1:c1 + c2].astype(jnp.bfloat16),
           wg[c1 + c2:].astype(jnp.bfloat16)]
    z, stp = fused_linear([x1, x2, x3], [sc1, sc2, sc3], [sh1, sh2, sh3],
                          wgs, bg, relu=True, with_stats=True, n_valid=N,
                          tm=tm_mlp, out_dtype=jnp.bfloat16)
    s, t = _bn_affine(stp, float(N), gg, beg)

    # mlp2 (256->256->128): each layer = one fused pallas_call (Linear + ReLU + BN stats);
    # the BN affine is deferred into the next layer's prologue.
    for (w, b, g, be) in params["mlp2"]:
        z, stp = fused_linear([z], [s], [t], [w.astype(jnp.bfloat16)], b,
                              relu=True, with_stats=True, n_valid=N,
                              tm=tm_mlp, out_dtype=jnp.bfloat16)
        s, t = _bn_affine(stp, float(N), g, be)

    # mlp3 (128 -> K), lane-padded to Kp=128 columns; padded biases -> -1e30.
    w3, b3 = params["mlp3_w"], params["mlp3_b"]
    K = b3.shape[0]
    Kp = ((K + 127) // 128) * 128
    w3p = jnp.pad(w3, ((0, 0), (0, Kp - K))).astype(jnp.bfloat16)
    b3p = jnp.concatenate([b3, jnp.full((Kp - K,), NEG_BIG, jnp.float32)])
    logits_p = fused_linear([z], [s], [t], [w3p], b3p, relu=False,
                            with_stats=False, tm=tm_mlp, out_dtype=jnp.float32)

    sw_p, score_p, wpos_p = softmax_score_pool(logits_p[:N], pos, B, V)
    logits = logits_p[:N, :K]
    return score_p[:, :K], wpos_p[:, :K, :], logits, sw_p[:, :K]


# --------------------------------------------------------------------------
# Parameter init (deterministic, PyTorch-like uniform bounds) & graph prep
# --------------------------------------------------------------------------

def init_linear(key, cin, cout):
    k1, k2 = jax.random.split(key)
    bound = 1.0 / (cin ** 0.5)
    w = jax.random.uniform(k1, (cin, cout), jnp.float32, -bound, bound)
    b = jax.random.uniform(k2, (cout,), jnp.float32, -bound, bound)
    return w, b


def init_mlp(key, channels):
    layers = []
    for i in range(1, len(channels)):
        key, sub = jax.random.split(key)
        w, b = init_linear(sub, channels[i - 1], channels[i])
        layers.append((w, b, jnp.ones((channels[i],), jnp.float32),
                       jnp.zeros((channels[i],), jnp.float32)))
    return layers


def init_params(key, input_dim, num_part):
    keys = jax.random.split(key, 6)
    params = {
        "gcu1": init_mlp(keys[0], [2 * input_dim, 32, 64]),
        "gcu2": init_mlp(keys[1], [2 * 64, 64, 128]),
        "gcu3": init_mlp(keys[2], [2 * 128, 128, 256]),
        "mlp_glb": init_mlp(keys[3], [64 + 128 + 256, 256]),
        "mlp2": init_mlp(keys[4], [256, 256, 128]),
    }
    params["mlp3_w"], params["mlp3_b"] = init_linear(keys[5], 128, num_part)
    return params


def build_neighbor_table(edge_index, num_nodes):
    """edge_index (2, E), rows = (src, dst): messages flow src -> dst.
    Returns node-major neighbor indices (N, dmax), mask (N, dmax), #edges."""
    src, dst = np.asarray(edge_index[0]), np.asarray(edge_index[1])
    deg = np.bincount(dst, minlength=num_nodes)
    dmax = max(int(deg.max()) if deg.size else 1, 1)
    nbr = np.zeros((num_nodes, dmax), np.int32)
    msk = np.zeros((num_nodes, dmax), np.float32)
    fill = np.zeros(num_nodes, np.int64)
    for s_, d_ in zip(src, dst):
        nbr[d_, fill[d_]] = s_
        msk[d_, fill[d_]] = 1.0
        fill[d_] += 1
    return jnp.asarray(nbr), jnp.asarray(msk), float(len(src))


# --------------------------------------------------------------------------

if __name__ == "__main__":
    B, V = 2, 16
    input_dim, num_part = 3, 8
    N = B * V

    key = jax.random.PRNGKey(0)
    kx, kparam = jax.random.split(key)
    x = jax.random.normal(kx, (N, input_dim), jnp.float32)

    # tpl_edge_index: per-batch ring graph, both directions (every node has degree 2)
    idx = np.arange(V)
    src_local = np.concatenate([idx, (idx + 1) % V])
    dst_local = np.concatenate([(idx + 1) % V, idx])
    src = np.concatenate([src_local + b * V for b in range(B)])
    dst = np.concatenate([dst_local + b * V for b in range(B)])
    edge_index = np.stack([src, dst]).astype(np.int32)          # (2, 2*N)

    nbr_nm, nbr_mask, e_count = build_neighbor_table(edge_index, N)
    params = init_params(kparam, input_dim, num_part)

    score, weighted_pos, logits, sw = handle_predictor_forward(
        params, x, nbr_nm, nbr_mask, e_count, B=B, V=V)
    score = jax.block_until_ready(score)

    assert score.shape == (N, num_part), score.shape
    assert weighted_pos.shape == (B, num_part, 3), weighted_pos.shape
    assert logits.shape == (N, num_part), logits.shape
    assert sw.shape == (N, num_part), sw.shape
    for a in (score, weighted_pos, logits, sw):
        assert bool(jnp.all(jnp.isfinite(a)))
    # softmax rows sum to 1; score columns sum to 1 per batch (per-part normalization)
    assert bool(jnp.allclose(jnp.sum(sw, axis=1), 1.0, atol=1e-4))
    assert bool(jnp.allclose(jnp.sum(score.reshape(B, V, num_part), axis=1), 1.0, atol=1e-3))
    print("KERNEL_OK")
</pallas_src>

<mosaic_0001>
module attributes {stable_mosaic.version = 11 : i64} {
  func.func @_uv_kernel(%arg0: i32, %arg1: memref<512x3xf32, #tpu.memory_space<vmem>>, %arg2: memref<1x3xf32, #tpu.memory_space<vmem>>, %arg3: memref<1x3xf32, #tpu.memory_space<vmem>>, %arg4: memref<3x64xbf16, #tpu.memory_space<vmem>>, %arg5: memref<1x64xf32, #tpu.memory_space<vmem>>, %arg6: memref<512x32xf32, #tpu.memory_space<vmem>>, %arg7: memref<512x32xf32, #tpu.memory_space<vmem>>) attributes {dimension_semantics = [#tpu.dimension_semantics<parallel>], iteration_bounds = array<i64: 1>, scalar_prefetch = 0 : i64, scratch_operands = 0 : i64, tpu.core_type = #tpu.core_type<tc>, window_params = [{transform_indices = @transform_0, window_bounds = array<i64: 512, 3>}, {pipeline_mode = #tpu.pipeline_mode<synchronous>, transform_indices = @transform_1, window_bounds = array<i64: 1, 3>}, {pipeline_mode = #tpu.pipeline_mode<synchronous>, transform_indices = @transform_2, window_bounds = array<i64: 1, 3>}, {pipeline_mode = #tpu.pipeline_mode<synchronous>, transform_indices = @transform_3, window_bounds = array<i64: 3, 64>}, {pipeline_mode = #tpu.pipeline_mode<synchronous>, transform_indices = @transform_4, window_bounds = array<i64: 1, 64>}, {transform_indices = @transform_5, window_bounds = array<i64: 512, 32>}, {transform_indices = @transform_6, window_bounds = array<i64: 512, 32>}]} {
    %c0 = arith.constant 0 : index
    %c0_0 = arith.constant 0 : index
    %0 = vector.load %arg1[%c0, %c0_0] : memref<512x3xf32, #tpu.memory_space<vmem>>, vector<512x3xf32>
    %c0_1 = arith.constant 0 : index
    %c0_2 = arith.constant 0 : index
    %1 = vector.load %arg2[%c0_1, %c0_2] : memref<1x3xf32, #tpu.memory_space<vmem>>, vector<1x3xf32>
    %2 = vector.broadcast %1 : vector<1x3xf32> to vector<512x3xf32>
    %3 = arith.mulf %0, %2 : vector<512x3xf32>
    %c0_3 = arith.constant 0 : index
    %c0_4 = arith.constant 0 : index
    %4 = vector.load %arg3[%c0_3, %c0_4] : memref<1x3xf32, #tpu.memory_space<vmem>>, vector<1x3xf32>
    %5 = vector.broadcast %4 : vector<1x3xf32> to vector<512x3xf32>
    %6 = arith.addf %3, %5 : vector<512x3xf32>
    %7 = arith.truncf %6 : vector<512x3xf32> to vector<512x3xbf16>
    %c0_5 = arith.constant 0 : index
    %c0_6 = arith.constant 0 : index
    %8 = vector.load %arg4[%c0_5, %c0_6] : memref<3x64xbf16, #tpu.memory_space<vmem>>, vector<3x64xbf16>
    %cst = arith.constant dense<0.000000e+00> : vector<512x64xf32>
    %9 = tpu.matmul %7, %8, %cst {dimension_numbers = #tpu.dot_dimension_numbers<[1], [0], [0], [1], [0, 0, 1, 1], [], []>} : vector<512x3xbf16>, vector<3x64xbf16>, vector<512x64xf32> -> vector<512x64xf32>
    %c0_7 = arith.constant 0 : index
    %c0_8 = arith.constant 0 : index
    %10 = vector.load %arg5[%c0_7, %c0_8] : memref<1x64xf32, #tpu.memory_space<vmem>>, vector<1x64xf32>
    %11 = vector.broadcast %10 : vector<1x64xf32> to vector<512x64xf32>
    %12 = arith.addf %9, %11 : vector<512x64xf32>
    %13 = vector.extract_strided_slice %12 {offsets = [0, 0], sizes = [512, 32], strides = [1, 1]} : vector<512x64xf32> to vector<512x32xf32>
    %c0_9 = arith.constant 0 : index
    %c0_10 = arith.constant 0 : index
    %14 = vector.load %arg6[%c0_9, %c0_10] : memref<512x32xf32, #tpu.memory_space<vmem>>, vector<512x32xf32>
    tpu.vector_store %arg6[%c0_9, %c0_10], %13 {strides = array<i32>} : memref<512x32xf32, #tpu.memory_space<vmem>>, vector<512x32xf32>,
    %15 = vector.extract_strided_slice %12 {offsets = [0, 32], sizes = [512, 32], strides = [1, 1]} : vector<512x64xf32> to vector<512x32xf32>
    %c0_11 = arith.constant 0 : index
    %c0_12 = arith.constant 0 : index
    %16 = vector.load %arg7[%c0_11, %c0_12] : memref<512x32xf32, #tpu.memory_space<vmem>>, vector<512x32xf32>
    tpu.vector_store %arg7[%c0_11, %c0_12], %15 {strides = array<i32>} : memref<512x32xf32, #tpu.memory_space<vmem>>, vector<512x32xf32>,
    return
  }
  func.func @transform_0(%arg0: i32) -> (i32, i32) {
    %c0_i32 = arith.constant 0 : i32
    %c0_i32_0 = arith.constant 0 : i32
    return %arg0, %c0_i32 : i32, i32
  }
  func.func @transform_1(%arg0: i32) -> (i32, i32) {
    %c0_i32 = arith.constant 0 : i32
    %c0_i32_0 = arith.constant 0 : i32
    %c0_i32_1 = arith.constant 0 : i32
    return %c0_i32, %c0_i32_0 : i32, i32
  }
  func.func @transform_2(%arg0: i32) -> (i32, i32) {
    %c0_i32 = arith.constant 0 : i32
    %c0_i32_0 = arith.constant 0 : i32
    %c0_i32_1 = arith.constant 0 : i32
    return %c0_i32, %c0_i32_0 : i32, i32
  }
  func.func @transform_3(%arg0: i32) -> (i32, i32) {
    %c0_i32 = arith.constant 0 : i32
    %c0_i32_0 = arith.constant 0 : i32
    %c0_i32_1 = arith.constant 0 : i32
    return %c0_i32, %c0_i32_0 : i32, i32
  }
  func.func @transform_4(%arg0: i32) -> (i32, i32) {
    %c0_i32 = arith.constant 0 : i32
    %c0_i32_0 = arith.constant 0 : i32
    %c0_i32_1 = arith.constant 0 : i32
    return %c0_i32, %c0_i32_0 : i32, i32
  }
  func.func @transform_5(%arg0: i32) -> (i32, i32) {
    %c0_i32 = arith.constant 0 : i32
    %c0_i32_0 = arith.constant 0 : i32
    return %arg0, %c0_i32 : i32, i32
  }
  func.func @transform_6(%arg0: i32) -> (i32, i32) {
    %c0_i32 = arith.constant 0 : i32
    %c0_i32_0 = arith.constant 0 : i32
    return %arg0, %c0_i32 : i32, i32
  }
}

</mosaic_0001>

<llo_original>
// kernel: tpu_custom_call.1
$region0: #{tpu_custom_call.1}
  #allocation0 [shape = 'u32[]', space=smem, size = 0x4, offset = 0x4, fixed_abs, tag = 'smem constant byte address 0x4 - core index']
  #allocation1 [shape = 'u32[144,128]{1,0:T(1,128)}', space=vmem, size = 0x12000, scoped, tag = 'internal scratch']
  %s0 = inlined_call_operand.vmem [shape: f32[512,3], index: 0, kind: input, shape index: {}]
  %s1 = inlined_call_operand.vmem [shape: f32[1,3], index: 1, kind: input, shape index: {}]
  %s2 = inlined_call_operand.vmem [shape: f32[1,3], index: 2, kind: input, shape index: {}]
  %s3 = inlined_call_operand.vmem [shape: bf16[3,64], index: 3, kind: input, shape index: {}]
  %s4 = inlined_call_operand.vmem [shape: f32[1,64], index: 4, kind: input, shape index: {}]
  %s5 = inlined_call_operand.vmem [shape: f32[512,32], index: 5, kind: output, shape index: {0}]
  %s6 = inlined_call_operand.vmem [shape: f32[512,32], index: 6, kind: output, shape index: {1}]
  %7 = xla_tuple %s5, %s6
  %s8 = sld [smem:[#allocation0]]
  $region38: #{tpu_custom_call.1} parent=0
    _
  %s10 = ssub.s32 1, %s8
  %s11 = scalar_select 0, %s10, %s8
  // Predicated region
  $region2: #{tpu_custom_call.1} parent=0 // pred_check
    _
  $region3: #{tpu_custom_call.1} parent=0 // pred_check_branch
    %13 = sbr.rel (0) target = $region5
  $region4: #{tpu_custom_call.1} parent=0 // pred_region
    _
  $region5: #{tpu_custom_call.1} parent=0 // pred_fallthru
    _
  // Predicated region
  $region6: #{tpu_custom_call.1} parent=0 // pred_check
    _
  $region7: #{tpu_custom_call.1} parent=0 // pred_check_branch
    %15 = sbr.rel (0) target = $region9
  $region8: #{tpu_custom_call.1} parent=0 // pred_region
    _
  $region9: #{tpu_custom_call.1} parent=0 // pred_fallthru
    _
  // Predicated region
  $region10: #{tpu_custom_call.1} parent=0 // pred_check
    _
  $region11: #{tpu_custom_call.1} parent=0 // pred_check_branch
    %17 = sbr.rel (0) target = $region13
  $region12: #{tpu_custom_call.1} parent=0 // pred_region
    _
  $region13: #{tpu_custom_call.1} parent=0 // pred_fallthru
    _
  // Predicated region
  $region14: #{tpu_custom_call.1} parent=0 // pred_check
    _
  $region15: #{tpu_custom_call.1} parent=0 // pred_check_branch
    %19 = sbr.rel (0) target = $region17
  $region16: #{tpu_custom_call.1} parent=0 // pred_region
    _
  $region17: #{tpu_custom_call.1} parent=0 // pred_fallthru
    _
  // Predicated region
  $region18: #{tpu_custom_call.1} parent=0 // pred_check
    _
  $region19: #{tpu_custom_call.1} parent=0 // pred_check_branch
    %21 = sbr.rel (0) target = $region21
  $region20: #{tpu_custom_call.1} parent=0 // pred_region
    _
  $region21: #{tpu_custom_call.1} parent=0 // pred_fallthru
    _
  %v23 = vld [vmem:[%s0] sm:$0xff]
  %v24 = vld [vmem:[%s0 + $0x8] sm:$0xff]
  %v25 = vld [vmem:[%s0 + $0x10] sm:$0xff]
  %v26 = vld [vmem:[%s0 + $0x18] sm:$0xff]
  %v27 = vld [vmem:[%s0 + $0x20] sm:$0xff]
  %v28 = vld [vmem:[%s0 + $0x28] sm:$0xff]
  %v29 = vld [vmem:[%s0 + $0x30] sm:$0xff]
  %v30 = vld [vmem:[%s0 + $0x38] sm:$0xff]
  %v31 = vld [vmem:[%s0 + $0x40] sm:$0xff]
  %v32 = vld [vmem:[%s0 + $0x48] sm:$0xff]
  %v33 = vld [vmem:[%s0 + $0x50] sm:$0xff]
  %v34 = vld [vmem:[%s0 + $0x58] sm:$0xff]
  %v35 = vld [vmem:[%s0 + $0x60] sm:$0xff]
  %v36 = vld [vmem:[%s0 + $0x68] sm:$0xff]
  %v37 = vld [vmem:[%s0 + $0x70] sm:$0xff]
  %v38 = vld [vmem:[%s0 + $0x78] sm:$0xff]
  %v39 = vld [vmem:[%s0 + $0x80] sm:$0xff]
  %v40 = vld [vmem:[%s0 + $0x88] sm:$0xff]
  %v41 = vld [vmem:[%s0 + $0x90] sm:$0xff]
  %v42 = vld [vmem:[%s0 + $0x98] sm:$0xff]
  %v43 = vld [vmem:[%s0 + $0xa0] sm:$0xff]
  %v44 = vld [vmem:[%s0 + $0xa8] sm:$0xff]
  %v45 = vld [vmem:[%s0 + $0xb0] sm:$0xff]
  %v46 = vld [vmem:[%s0 + $0xb8] sm:$0xff]
  %v47 = vld [vmem:[%s0 + $0xc0] sm:$0xff]
  %v48 = vld [vmem:[%s0 + $0xc8] sm:$0xff]
  %v49 = vld [vmem:[%s0 + $0xd0] sm:$0xff]
  %v50 = vld [vmem:[%s0 + $0xd8] sm:$0xff]
  %v51 = vld [vmem:[%s0 + $0xe0] sm:$0xff]
  %v52 = vld [vmem:[%s0 + $0xe8] sm:$0xff]
  %v53 = vld [vmem:[%s0 + $0xf0] sm:$0xff]
  %v54 = vld [vmem:[%s0 + $0xf8] sm:$0xff]
  %v55 = vld [vmem:[%s0 + $0x100] sm:$0xff]
  %v56 = vld [vmem:[%s0 + $0x108] sm:$0xff]
  %v57 = vld [vmem:[%s0 + $0x110] sm:$0xff]
  %v58 = vld [vmem:[%s0 + $0x118] sm:$0xff]
  %v59 = vld [vmem:[%s0 + $0x120] sm:$0xff]
  %v60 = vld [vmem:[%s0 + $0x128] sm:$0xff]
  %v61 = vld [vmem:[%s0 + $0x130] sm:$0xff]
  %v62 = vld [vmem:[%s0 + $0x138] sm:$0xff]
  %v63 = vld [vmem:[%s0 + $0x140] sm:$0xff]
  %v64 = vld [vmem:[%s0 + $0x148] sm:$0xff]
  %v65 = vld [vmem:[%s0 + $0x150] sm:$0xff]
  %v66 = vld [vmem:[%s0 + $0x158] sm:$0xff]
  %v67 = vld [vmem:[%s0 + $0x160] sm:$0xff]
  %v68 = vld [vmem:[%s0 + $0x168] sm:$0xff]
  %v69 = vld [vmem:[%s0 + $0x170] sm:$0xff]
  %v70 = vld [vmem:[%s0 + $0x178] sm:$0xff]
  %v71 = vld [vmem:[%s0 + $0x180] sm:$0xff]
  %v72 = vld [vmem:[%s0 + $0x188] sm:$0xff]
  %v73 = vld [vmem:[%s0 + $0x190] sm:$0xff]
  %v74 = vld [vmem:[%s0 + $0x198] sm:$0xff]
  %v75 = vld [vmem:[%s0 + $0x1a0] sm:$0xff]
  %v76 = vld [vmem:[%s0 + $0x1a8] sm:$0xff]
  %v77 = vld [vmem:[%s0 + $0x1b0] sm:$0xff]
  %v78 = vld [vmem:[%s0 + $0x1b8] sm:$0xff]
  %v79 = vld [vmem:[%s0 + $0x1c0] sm:$0xff]
  %v80 = vld [vmem:[%s0 + $0x1c8] sm:$0xff]
  %v81 = vld [vmem:[%s0 + $0x1d0] sm:$0xff]
  %v82 = vld [vmem:[%s0 + $0x1d8] sm:$0xff]
  %v83 = vld [vmem:[%s0 + $0x1e0] sm:$0xff]
  %v84 = vld [vmem:[%s0 + $0x1e8] sm:$0xff]
  %v85 = vld [vmem:[%s0 + $0x1f0] sm:$0xff]
  %v86 = vld [vmem:[%s0 + $0x1f8] sm:$0xff]
  %v87 = vld [vmem:[%s1] sm:$0x1]
  %v89 = vlaneseq
  %v90 = vshrl.u32 %v89, 7
  %v91 = vsub.s32 0, %v90
  %v92 = vrot.slane %v87, %v91
  %v94 = vmul.f32 %v23, %v92
  %v95 = vmul.f32 %v24, %v92
  %v96 = vmul.f32 %v25, %v92
  %v97 = vmul.f32 %v26, %v92
  %v98 = vmul.f32 %v27, %v92
  %v99 = vmul.f32 %v28, %v92
  %v100 = vmul.f32 %v29, %v92
  %v101 = vmul.f32 %v30, %v92
  %v102 = vmul.f32 %v31, %v92
  %v103 = vmul.f32 %v32, %v92
  %v104 = vmul.f32 %v33, %v92
  %v105 = vmul.f32 %v34, %v92
  %v106 = vmul.f32 %v35, %v92
  %v107 = vmul.f32 %v36, %v92
  %v108 = vmul.f32 %v37, %v92
  %v109 = vmul.f32 %v38, %v92
  %v110 = vmul.f32 %v39, %v92
  %v111 = vmul.f32 %v40, %v92
  %v112 = vmul.f32 %v41, %v92
  %v113 = vmul.f32 %v42, %v92
  %v114 = vmul.f32 %v43, %v92
  %v115 = vmul.f32 %v44, %v92
  %v116 = vmul.f32 %v45, %v92
  %v117 = vmul.f32 %v46, %v92
  %v118 = vmul.f32 %v47, %v92
  %v119 = vmul.f32 %v48, %v92
  %v120 = vmul.f32 %v49, %v92
  %v121 = vmul.f32 %v50, %v92
  %v122 = vmul.f32 %v51, %v92
  %v123 = vmul.f32 %v52, %v92
  %v124 = vmul.f32 %v53, %v92
  %v125 = vmul.f32 %v54, %v92
  %v126 = vmul.f32 %v55, %v92
  %v127 = vmul.f32 %v56, %v92
  %v128 = vmul.f32 %v57, %v92
  %v129 = vmul.f32 %v58, %v92
  %v130 = vmul.f32 %v59, %v92
  %v131 = vmul.f32 %v60, %v92
  %v132 = vmul.f32 %v61, %v92
  %v133 = vmul.f32 %v62, %v92
  %v134 = vmul.f32 %v63, %v92
  %v135 = vmul.f32 %v64, %v92
  %v136 = vmul.f32 %v65, %v92
  %v137 = vmul.f32 %v66, %v92
  %v138 = vmul.f32 %v67, %v92
  %v139 = vmul.f32 %v68, %v92
  %v140 = vmul.f32 %v69, %v92
  %v141 = vmul.f32 %v70, %v92
  %v142 = vmul.f32 %v71, %v92
  %v143 = vmul.f32 %v72, %v92
  %v144 = vmul.f32 %v73, %v92
  %v145 = vmul.f32 %v74, %v92
  %v146 = vmul.f32 %v75, %v92
  %v147 = vmul.f32 %v76, %v92
  %v148 = vmul.f32 %v77, %v92
  %v149 = vmul.f32 %v78, %v92
  %v150 = vmul.f32 %v79, %v92
  %v151 = vmul.f32 %v80, %v92
  %v152 = vmul.f32 %v81, %v92
  %v153 = vmul.f32 %v82, %v92
  %v154 = vmul.f32 %v83, %v92
  %v155 = vmul.f32 %v84, %v92
  %v156 = vmul.f32 %v85, %v92
  %v157 = vmul.f32 %v86, %v92
  %v158 = vld [vmem:[%s2] sm:$0x1]
  %v160 = vlaneseq
  %v161 = vshrl.u32 %v160, 7
  %v162 = vsub.s32 0, %v161
  %v163 = vrot.slane %v158, %v162
  %v165 = vadd.f32 %v94, %v163
  %v166 = vadd.f32 %v95, %v163
  %v167 = vadd.f32 %v96, %v163
  %v168 = vadd.f32 %v97, %v163
  %v169 = vadd.f32 %v98, %v163
  %v170 = vadd.f32 %v99, %v163
  %v171 = vadd.f32 %v100, %v163
  %v172 = vadd.f32 %v101, %v163
  %v173 = vadd.f32 %v102, %v163
  %v174 = vadd.f32 %v103, %v163
  %v175 = vadd.f32 %v104, %v163
  %v176 = vadd.f32 %v105, %v163
  %v177 = vadd.f32 %v106, %v163
  %v178 = vadd.f32 %v107, %v163
  %v179 = vadd.f32 %v108, %v163
  %v180 = vadd.f32 %v109, %v163
  %v181 = vadd.f32 %v110, %v163
  %v182 = vadd.f32 %v111, %v163
  %v183 = vadd.f32 %v112, %v163
  %v184 = vadd.f32 %v113, %v163
  %v185 = vadd.f32 %v114, %v163
  %v186 = vadd.f32 %v115, %v163
  %v187 = vadd.f32 %v116, %v163
  %v188 = vadd.f32 %v117, %v163
  %v189 = vadd.f32 %v118, %v163
  %v190 = vadd.f32 %v119, %v163
  %v191 = vadd.f32 %v120, %v163
  %v192 = vadd.f32 %v121, %v163
  %v193 = vadd.f32 %v122, %v163
  %v194 = vadd.f32 %v123, %v163
  %v195 = vadd.f32 %v124, %v163
  %v196 = vadd.f32 %v125, %v163
  %v197 = vadd.f32 %v126, %v163
  %v198 = vadd.f32 %v127, %v163
  %v199 = vadd.f32 %v128, %v163
  %v200 = vadd.f32 %v129, %v163
  %v201 = vadd.f32 %v130, %v163
  %v202 = vadd.f32 %v131, %v163
  %v203 = vadd.f32 %v132, %v163
  %v204 = vadd.f32 %v133, %v163
  %v205 = vadd.f32 %v134, %v163
  %v206 = vadd.f32 %v135, %v163
  %v207 = vadd.f32 %v136, %v163
  %v208 = vadd.f32 %v137, %v163
  %v209 = vadd.f32 %v138, %v163
  %v210 = vadd.f32 %v139, %v163
  %v211 = vadd.f32 %v140, %v163
  %v212 = vadd.f32 %v141, %v163
  %v213 = vadd.f32 %v142, %v163
  %v214 = vadd.f32 %v143, %v163
  %v215 = vadd.f32 %v144, %v163
  %v216 = vadd.f32 %v145, %v163
  %v217 = vadd.f32 %v146, %v163
  %v218 = vadd.f32 %v147, %v163
  %v219 = vadd.f32 %v148, %v163
  %v220 = vadd.f32 %v149, %v163
  %v221 = vadd.f32 %v150, %v163
  %v222 = vadd.f32 %v151, %v163
  %v223 = vadd.f32 %v152, %v163
  %v224 = vadd.f32 %v153, %v163
  %v225 = vadd.f32 %v154, %v163
  %v226 = vadd.f32 %v155, %v163
  %v227 = vadd.f32 %v156, %v163
  %v228 = vadd.f32 %v157, %v163
  %v229 = vpack.c.bf16 %v166, %v165
  %v230 = vpack.c.bf16 %v168, %v167
  %v231 = vpack.c.bf16 %v170, %v169
  %v232 = vpack.c.bf16 %v172, %v171
  %v233 = vpack.c.bf16 %v174, %v173
  %v234 = vpack.c.bf16 %v176, %v175
  %v235 = vpack.c.bf16 %v178, %v177
  %v236 = vpack.c.bf16 %v180, %v179
  %v237 = vpack.c.bf16 %v182, %v181
  %v238 = vpack.c.bf16 %v184, %v183
  %v239 = vpack.c.bf16 %v186, %v185
  %v240 = vpack.c.bf16 %v188, %v187
  %v241 = vpack.c.bf16 %v190, %v189
  %v242 = vpack.c.bf16 %v192, %v191
  %v243 = vpack.c.bf16 %v194, %v193
  %v244 = vpack.c.bf16 %v196, %v195
  %v245 = vpack.c.bf16 %v198, %v197
  %v246 = vpack.c.bf16 %v200, %v199
  %v247 = vpack.c.bf16 %v202, %v201
  %v248 = vpack.c.bf16 %v204, %v203
  %v249 = vpack.c.bf16 %v206, %v205
  %v250 = vpack.c.bf16 %v208, %v207
  %v251 = vpack.c.bf16 %v210, %v209
  %v252 = vpack.c.bf16 %v212, %v211
  %v253 = vpack.c.bf16 %v214, %v213
  %v254 = vpack.c.bf16 %v216, %v215
  %v255 = vpack.c.bf16 %v218, %v217
  %v256 = vpack.c.bf16 %v220, %v219
  %v257 = vpack.c.bf16 %v222, %v221
  %v258 = vpack.c.bf16 %v224, %v223
  %v259 = vpack.c.bf16 %v226, %v225
  %v260 = vpack.c.bf16 %v228, %v227
  %v261 = vld [vmem:[%s3] sm:$0x3]
  %v262 = vld [vmem:[%s4] sm:$0x1]
  %v264 = vlaneseq
  %v265 = vshrl.u32 %v264, 7
  %v266 = vsub.s32 0, %v265
  %v267 = vrot.slane %v262, %v266
  %vm269 = vcmask 23552
  %v271 = vsel %vm269, %v229, 0
  %v274 = vsel %vm269, %v230, 0
  %v277 = vsel %vm269, %v231, 0
  %v280 = vsel %vm269, %v232, 0
  %v283 = vsel %vm269, %v233, 0
  %v286 = vsel %vm269, %v234, 0
  %v289 = vsel %vm269, %v235, 0
  %v292 = vsel %vm269, %v236, 0
  %v295 = vsel %vm269, %v237, 0
  %v298 = vsel %vm269, %v238, 0
  %v301 = vsel %vm269, %v239, 0
  %v304 = vsel %vm269, %v240, 0
  %v307 = vsel %vm269, %v241, 0
  %v310 = vsel %vm269, %v242, 0
  %v313 = vsel %vm269, %v243, 0
  %v316 = vsel %vm269, %v244, 0
  %v319 = vsel %vm269, %v245, 0
  %v322 = vsel %vm269, %v246, 0
  %v325 = vsel %vm269, %v247, 0
  %v328 = vsel %vm269, %v248, 0
  %v331 = vsel %vm269, %v249, 0
  %v334 = vsel %vm269, %v250, 0
  %v337 = vsel %vm269, %v251, 0
  %v340 = vsel %vm269, %v252, 0
  %v343 = vsel %vm269, %v253, 0
  %v346 = vsel %vm269, %v254, 0
  %v349 = vsel %vm269, %v255, 0
  %v352 = vsel %vm269, %v256, 0
  %v355 = vsel %vm269, %v257, 0
  %v358 = vsel %vm269, %v258, 0
  %v361 = vsel %vm269, %v259, 0
  %v364 = vsel %vm269, %v260, 0
  %vm366 = vcmask 1040384
  %vm367 = vcmask 1041408
  %v368 = vsel %vm366, 4294967295, 65535
  %v369 = vsel %vm367, %v368, 0
  %v371 = vand.u32 %v261, %v369
  %373 = vmatprep.subr.bf16.mxu0 0
  %374 = vmatpush1.bf16.msra.mxu0 0
  %375 = vmatprep.subr.bf16.mxu0 0
  %376 = vmatpush1.bf16.msra.mxu0 0
  %377 = vmatprep.subr.bf16.mxu0 0
  %378 = vmatpush1.bf16.msra.mxu0 0
  %379 = vmatprep.subr.bf16.mxu0 0
  %380 = vmatpush1.bf16.msra.mxu0 0
  %381 = vmatprep.subr.bf16.mxu0 0
  %382 = vmatpush1.bf16.msra.mxu0 0
  %383 = vmatprep.subr.bf16.mxu0 0
  %384 = vmatpush1.bf16.msra.mxu0 0
  %385 = vmatprep.subr.bf16.mxu0 0
  %386 = vmatpush1.bf16.msra.mxu0 0
  %387 = vmatprep.subr.bf16.mxu0 0
  %388 = vmatpush1.bf16.msra.mxu0 %v371
  %389 = vmatprep.subr.bf16.mxu0 0
  %390 = vmatpush2.bf16.msra.mxu0 0
  %391 = vmatprep.subr.bf16.mxu0 0
  %392 = vmatpush2.bf16.msra.mxu0 0
  %393 = vmatprep.subr.bf16.mxu0 0
  %394 = vmatpush2.bf16.msra.mxu0 0
  %395 = vmatprep.subr.bf16.mxu0 0
  %396 = vmatpush2.bf16.msra.mxu0 0
  %397 = vmatprep.subr.bf16.mxu0 0
  %398 = vmatpush2.bf16.msra.mxu0 0
  %399 = vmatprep.subr.bf16.mxu0 0
  %400 = vmatpush2.bf16.msra.mxu0 0
  %401 = vmatprep.subr.bf16.mxu0 0
  %402 = vmatpush2.bf16.msra.mxu0 0
  %403 = vmatprep.subr.bf16.mxu0 0
  %404 = vmatpush2.bf16.msra.mxu0 0
  %405 = vmatprep.mubr.bf16.mxu0 0
  %406 = vmatmul.mubr.bf16.gmra.mxu0 %v271
  %v407 = vpop.f32.mrf.mxu0
  %v408 = vadd.f32 %v267, %v407
  %v409 = vpop.f32.mrf.mxu0
  %v410 = vpop.f32.mrf.mxu0
  %v411 = vadd.f32 %v267, %v410
  %v412 = vpop.f32.mrf.mxu0
  %413 = vmatprep.mubr.bf16.mxu0 0
  %414 = vmatmul.mubr.bf16.gmra.mxu0 %v274
  %v415 = vpop.f32.mrf.mxu0
  %v416 = vadd.f32 %v267, %v415
  %v417 = vpop.f32.mrf.mxu0
  %v418 = vpop.f32.mrf.mxu0
  %v419 = vadd.f32 %v267, %v418
  %v420 = vpop.f32.mrf.mxu0
  %421 = vmatprep.mubr.bf16.mxu0 0
  %422 = vmatmul.mubr.bf16.gmra.mxu0 %v277
  %v423 = vpop.f32.mrf.mxu0
  %v424 = vadd.f32 %v267, %v423
  %v425 = vpop.f32.mrf.mxu0
  %v426 = vpop.f32.mrf.mxu0
  %v427 = vadd.f32 %v267, %v426
  %v428 = vpop.f32.mrf.mxu0
  %429 = vmatprep.mubr.bf16.mxu0 0
  %430 = vmatmul.mubr.bf16.gmra.mxu0 %v280
  %v431 = vpop.f32.mrf.mxu0
  %v432 = vadd.f32 %v267, %v431
  %v433 = vpop.f32.mrf.mxu0
  %v434 = vpop.f32.mrf.mxu0
  %v435 = vadd.f32 %v267, %v434
  %v436 = vpop.f32.mrf.mxu0
  %437 = vmatprep.mubr.bf16.mxu0 0
  %438 = vmatmul.mubr.bf16.gmra.mxu0 %v283
  %v439 = vpop.f32.mrf.mxu0
  %v440 = vadd.f32 %v267, %v439
  %v441 = vpop.f32.mrf.mxu0
  %v442 = vpop.f32.mrf.mxu0
  %v443 = vadd.f32 %v267, %v442
  %v444 = vpop.f32.mrf.mxu0
  %445 = vmatprep.mubr.bf16.mxu0 0
  %446 = vmatmul.mubr.bf16.gmra.mxu0 %v286
  %v447 = vpop.f32.mrf.mxu0
  %v448 = vadd.f32 %v267, %v447
  %v449 = vpop.f32.mrf.mxu0
  %v450 = vpop.f32.mrf.mxu0
  %v451 = vadd.f32 %v267, %v450
  %v452 = vpop.f32.mrf.mxu0
  %453 = vmatprep.mubr.bf16.mxu0 0
  %454 = vmatmul.mubr.bf16.gmra.mxu0 %v289
  %v455 = vpop.f32.mrf.mxu0
  %v456 = vadd.f32 %v267, %v455
  %v457 = vpop.f32.mrf.mxu0
  %v458 = vpop.f32.mrf.mxu0
  %v459 = vadd.f32 %v267, %v458
  %v460 = vpop.f32.mrf.mxu0
  %461 = vmatprep.mubr.bf16.mxu0 0
  %462 = vmatmul.mubr.bf16.gmra.mxu0 %v292
  %v463 = vpop.f32.mrf.mxu0
  %v464 = vadd.f32 %v267, %v463
  %v465 = vpop.f32.mrf.mxu0
  %v466 = vpop.f32.mrf.mxu0
  %v467 = vadd.f32 %v267, %v466
  %v468 = vpop.f32.mrf.mxu0
  %469 = vmatprep.mubr.bf16.mxu0 0
  %470 = vmatmul.mubr.bf16.gmra.mxu0 %v295
  %v471 = vpop.f32.mrf.mxu0
  %v472 = vadd.f32 %v267, %v471
  %v473 = vpop.f32.mrf.mxu0
  %v474 = vpop.f32.mrf.mxu0
  %v475 = vadd.f32 %v267, %v474
  %v476 = vpop.f32.mrf.mxu0
  %477 = vmatprep.mubr.bf16.mxu0 0
  %478 = vmatmul.mubr.bf16.gmra.mxu0 %v298
  %v479 = vpop.f32.mrf.mxu0
  %v480 = vadd.f32 %v267, %v479
  %v481 = vpop.f32.mrf.mxu0
  %v482 = vpop.f32.mrf.mxu0
  %v483 = vadd.f32 %v267, %v482
  %v484 = vpop.f32.mrf.mxu0
  %485 = vmatprep.mubr.bf16.mxu0 0
  %486 = vmatmul.mubr.bf16.gmra.mxu0 %v301
  %v487 = vpop.f32.mrf.mxu0
  %v488 = vadd.f32 %v267, %v487
  %v489 = vpop.f32.mrf.mxu0
  %v490 = vpop.f32.mrf.mxu0
  %v491 = vadd.f32 %v267, %v490
  %v492 = vpop.f32.mrf.mxu0
  %493 = vmatprep.mubr.bf16.mxu0 0
  %494 = vmatmul.mubr.bf16.gmra.mxu0 %v304
  %v495 = vpop.f32.mrf.mxu0
  %v496 = vadd.f32 %v267, %v495
  %v497 = vpop.f32.mrf.mxu0
  %v498 = vpop.f32.mrf.mxu0
  %v499 = vadd.f32 %v267, %v498
  %v500 = vpop.f32.mrf.mxu0
  %501 = vmatprep.mubr.bf16.mxu0 0
  %502 = vmatmul.mubr.bf16.gmra.mxu0 %v307
  %v503 = vpop.f32.mrf.mxu0
  %v504 = vadd.f32 %v267, %v503
  %v505 = vpop.f32.mrf.mxu0
  %v506 = vpop.f32.mrf.mxu0
  %v507 = vadd.f32 %v267, %v506
  %v508 = vpop.f32.mrf.mxu0
  %509 = vmatprep.mubr.bf16.mxu0 0
  %510 = vmatmul.mubr.bf16.gmra.mxu0 %v310
  %v511 = vpop.f32.mrf.mxu0
  %v512 = vadd.f32 %v267, %v511
  %v513 = vpop.f32.mrf.mxu0
  %v514 = vpop.f32.mrf.mxu0
  %v515 = vadd.f32 %v267, %v514
  %v516 = vpop.f32.mrf.mxu0
  %517 = vmatprep.mubr.bf16.mxu0 0
  %518 = vmatmul.mubr.bf16.gmra.mxu0 %v313
  %v519 = vpop.f32.mrf.mxu0
  %v520 = vadd.f32 %v267, %v519
  %v521 = vpop.f32.mrf.mxu0
  %v522 = vpop.f32.mrf.mxu0
  %v523 = vadd.f32 %v267, %v522
  %v524 = vpop.f32.mrf.mxu0
  %525 = vmatprep.mubr.bf16.mxu0 0
  %526 = vmatmul.mubr.bf16.gmra.mxu0 %v316
  %v527 = vpop.f32.mrf.mxu0
  %v528 = vadd.f32 %v267, %v527
  %v529 = vpop.f32.mrf.mxu0
  %v530 = vpop.f32.mrf.mxu0
  %v531 = vadd.f32 %v267, %v530
  %v532 = vpop.f32.mrf.mxu0
  %533 = vmatprep.mubr.bf16.mxu0 0
  %534 = vmatmul.mubr.bf16.gmra.mxu0 %v319
  %v535 = vpop.f32.mrf.mxu0
  %v536 = vadd.f32 %v267, %v535
  %v537 = vpop.f32.mrf.mxu0
  %v538 = vpop.f32.mrf.mxu0
  %v539 = vadd.f32 %v267, %v538
  %v540 = vpop.f32.mrf.mxu0
  %541 = vmatprep.mubr.bf16.mxu0 0
  %542 = vmatmul.mubr.bf16.gmra.mxu0 %v322
  %v543 = vpop.f32.mrf.mxu0
  %v544 = vadd.f32 %v267, %v543
  %v545 = vpop.f32.mrf.mxu0
  %v546 = vpop.f32.mrf.mxu0
  %v547 = vadd.f32 %v267, %v546
  %v548 = vpop.f32.mrf.mxu0
  %549 = vmatprep.mubr.bf16.mxu0 0
  %550 = vmatmul.mubr.bf16.gmra.mxu0 %v325
  %v551 = vpop.f32.mrf.mxu0
  %v552 = vadd.f32 %v267, %v551
  %v553 = vpop.f32.mrf.mxu0
  %v554 = vpop.f32.mrf.mxu0
  %v555 = vadd.f32 %v267, %v554
  %v556 = vpop.f32.mrf.mxu0
  %557 = vmatprep.mubr.bf16.mxu0 0
  %558 = vmatmul.mubr.bf16.gmra.mxu0 %v328
  %v559 = vpop.f32.mrf.mxu0
  %v560 = vadd.f32 %v267, %v559
  %v561 = vpop.f32.mrf.mxu0
  %v562 = vpop.f32.mrf.mxu0
  %v563 = vadd.f32 %v267, %v562
  %v564 = vpop.f32.mrf.mxu0
  %565 = vmatprep.mubr.bf16.mxu0 0
  %566 = vmatmul.mubr.bf16.gmra.mxu0 %v331
  %v567 = vpop.f32.mrf.mxu0
  %v568 = vadd.f32 %v267, %v567
  %v569 = vpop.f32.mrf.mxu0
  %v570 = vpop.f32.mrf.mxu0
  %v571 = vadd.f32 %v267, %v570
  %v572 = vpop.f32.mrf.mxu0
  %573 = vmatprep.mubr.bf16.mxu0 0
  %574 = vmatmul.mubr.bf16.gmra.mxu0 %v334
  %v575 = vpop.f32.mrf.mxu0
  %v576 = vadd.f32 %v267, %v575
  %v577 = vpop.f32.mrf.mxu0
  %v578 = vpop.f32.mrf.mxu0
  %v579 = vadd.f32 %v267, %v578
  %v580 = vpop.f32.mrf.mxu0
  %581 = vmatprep.mubr.bf16.mxu0 0
  %582 = vmatmul.mubr.bf16.gmra.mxu0 %v337
  %v583 = vpop.f32.mrf.mxu0
  %v584 = vadd.f32 %v267, %v583
  %v585 = vpop.f32.mrf.mxu0
  %v586 = vpop.f32.mrf.mxu0
  %v587 = vadd.f32 %v267, %v586
  %v588 = vpop.f32.mrf.mxu0
  %589 = vmatprep.mubr.bf16.mxu0 0
  %590 = vmatmul.mubr.bf16.gmra.mxu0 %v340
  %v591 = vpop.f32.mrf.mxu0
  %v592 = vadd.f32 %v267, %v591
  %v593 = vpop.f32.mrf.mxu0
  %v594 = vpop.f32.mrf.mxu0
  %v595 = vadd.f32 %v267, %v594
  %v596 = vpop.f32.mrf.mxu0
  %597 = vmatprep.mubr.bf16.mxu0 0
  %598 = vmatmul.mubr.bf16.gmra.mxu0 %v343
  %v599 = vpop.f32.mrf.mxu0
  %v600 = vadd.f32 %v267, %v599
  %v601 = vpop.f32.mrf.mxu0
  %v602 = vpop.f32.mrf.mxu0
  %v603 = vadd.f32 %v267, %v602
  %v604 = vpop.f32.mrf.mxu0
  %605 = vmatprep.mubr.bf16.mxu0 0
  %606 = vmatmul.mubr.bf16.gmra.mxu0 %v346
  %v607 = vpop.f32.mrf.mxu0
  %v608 = vadd.f32 %v267, %v607
  %v609 = vpop.f32.mrf.mxu0
  %v610 = vpop.f32.mrf.mxu0
  %v611 = vadd.f32 %v267, %v610
  %v612 = vpop.f32.mrf.mxu0
  %613 = vmatprep.mubr.bf16.mxu0 0
  %614 = vmatmul.mubr.bf16.gmra.mxu0 %v349
  %v615 = vpop.f32.mrf.mxu0
  %v616 = vadd.f32 %v267, %v615
  %v617 = vpop.f32.mrf.mxu0
  %v618 = vpop.f32.mrf.mxu0
  %v619 = vadd.f32 %v267, %v618
  %v620 = vpop.f32.mrf.mxu0
  %621 = vmatprep.mubr.bf16.mxu0 0
  %622 = vmatmul.mubr.bf16.gmra.mxu0 %v352
  %v623 = vpop.f32.mrf.mxu0
  %v624 = vadd.f32 %v267, %v623
  %v625 = vpop.f32.mrf.mxu0
  %v626 = vpop.f32.mrf.mxu0
  %v627 = vadd.f32 %v267, %v626
  %v628 = vpop.f32.mrf.mxu0
  %629 = vmatprep.mubr.bf16.mxu0 0
  %630 = vmatmul.mubr.bf16.gmra.mxu0 %v355
  %v631 = vpop.f32.mrf.mxu0
  %v632 = vadd.f32 %v267, %v631
  %v633 = vpop.f32.mrf.mxu0
  %v634 = vpop.f32.mrf.mxu0
  %v635 = vadd.f32 %v267, %v634
  %v636 = vpop.f32.mrf.mxu0
  %637 = vmatprep.mubr.bf16.mxu0 0
  %638 = vmatmul.mubr.bf16.gmra.mxu0 %v358
  %v639 = vpop.f32.mrf.mxu0
  %v640 = vadd.f32 %v267, %v639
  %v641 = vpop.f32.mrf.mxu0
  %v642 = vpop.f32.mrf.mxu0
  %v643 = vadd.f32 %v267, %v642
  %v644 = vpop.f32.mrf.mxu0
  %645 = vmatprep.mubr.bf16.mxu0 0
  %646 = vmatmul.mubr.bf16.gmra.mxu0 %v361
  %v647 = vpop.f32.mrf.mxu0
  %v648 = vadd.f32 %v267, %v647
  %v649 = vpop.f32.mrf.mxu0
  %v650 = vpop.f32.mrf.mxu0
  %v651 = vadd.f32 %v267, %v650
  %v652 = vpop.f32.mrf.mxu0
  %653 = vmatprep.mubr.bf16.mxu0 0
  %654 = vmatmul.mubr.bf16.gmra.mxu0 %v364
  %v655 = vpop.f32.mrf.mxu0
  %v656 = vadd.f32 %v267, %v655
  %v657 = vpop.f32.mrf.mxu0
  %v658 = vpop.f32.mrf.mxu0
  %v659 = vadd.f32 %v267, %v658
  %v660 = vpop.f32.mrf.mxu0
  %661 = vdwg.mxu0
  %vm662 = vcmask 261120
  %663 = vst.msk [vmem:[%s5] sm:$0xff] %vm662, %v408
  %664 = vst.msk [vmem:[%s5 + $0x8] sm:$0xff] %vm662, %v411
  %665 = vst.msk [vmem:[%s5 + $0x10] sm:$0xff] %vm662, %v416
  %666 = vst.msk [vmem:[%s5 + $0x18] sm:$0xff] %vm662, %v419
  %667 = vst.msk [vmem:[%s5 + $0x20] sm:$0xff] %vm662, %v424
  %668 = vst.msk [vmem:[%s5 + $0x28] sm:$0xff] %vm662, %v427
  %669 = vst.msk [vmem:[%s5 + $0x30] sm:$0xff] %vm662, %v432
  %670 = vst.msk [vmem:[%s5 + $0x38] sm:$0xff] %vm662, %v435
  %671 = vst.msk [vmem:[%s5 + $0x40] sm:$0xff] %vm662, %v440
  %672 = vst.msk [vmem:[%s5 + $0x48] sm:$0xff] %vm662, %v443
  %673 = vst.msk [vmem:[%s5 + $0x50] sm:$0xff] %vm662, %v448
  %674 = vst.msk [vmem:[%s5 + $0x58] sm:$0xff] %vm662, %v451
  %675 = vst.msk [vmem:[%s5 + $0x60] sm:$0xff] %vm662, %v456
  %676 = vst.msk [vmem:[%s5 + $0x68] sm:$0xff] %vm662, %v459
  %677 = vst.msk [vmem:[%s5 + $0x70] sm:$0xff] %vm662, %v464
  %678 = vst.msk [vmem:[%s5 + $0x78] sm:$0xff] %vm662, %v467
  %679 = vst.msk [vmem:[%s5 + $0x80] sm:$0xff] %vm662, %v472
  %680 = vst.msk [vmem:[%s5 + $0x88] sm:$0xff] %vm662, %v475
  %681 = vst.msk [vmem:[%s5 + $0x90] sm:$0xff] %vm662, %v480
  %682 = vst.msk [vmem:[%s5 + $0x98] sm:$0xff] %vm662, %v483
  %683 = vst.msk [vmem:[%s5 + $0xa0] sm:$0xff] %vm662, %v488
  %684 = vst.msk [vmem:[%s5 + $0xa8] sm:$0xff] %vm662, %v491
  %685 = vst.msk [vmem:[%s5 + $0xb0] sm:$0xff] %vm662, %v496
  %686 = vst.msk [vmem:[%s5 + $0xb8] sm:$0xff] %vm662, %v499
  %687 = vst.msk [vmem:[%s5 + $0xc0] sm:$0xff] %vm662, %v504
  %688 = vst.msk [vmem:[%s5 + $0xc8] sm:$0xff] %vm662, %v507
  %689 = vst.msk [vmem:[%s5 + $0xd0] sm:$0xff] %vm662, %v512
  %690 = vst.msk [vmem:[%s5 + $0xd8] sm:$0xff] %vm662, %v515
  %691 = vst.msk [vmem:[%s5 + $0xe0] sm:$0xff] %vm662, %v520
  %692 = vst.msk [vmem:[%s5 + $0xe8] sm:$0xff] %vm662, %v523
  %693 = vst.msk [vmem:[%s5 + $0xf0] sm:$0xff] %vm662, %v528
  %694 = vst.msk [vmem:[%s5 + $0xf8] sm:$0xff] %vm662, %v531
  %695 = vst.msk [vmem:[%s5 + $0x100] sm:$0xff] %vm662, %v536
  %696 = vst.msk [vmem:[%s5 + $0x108] sm:$0xff] %vm662, %v539
  %697 = vst.msk [vmem:[%s5 + $0x110] sm:$0xff] %vm662, %v544
  %698 = vst.msk [vmem:[%s5 + $0x118] sm:$0xff] %vm662, %v547
  %699 = vst.msk [vmem:[%s5 + $0x120] sm:$0xff] %vm662, %v552
  %700 = vst.msk [vmem:[%s5 + $0x128] sm:$0xff] %vm662, %v555
  %701 = vst.msk [vmem:[%s5 + $0x130] sm:$0xff] %vm662, %v560
  %702 = vst.msk [vmem:[%s5 + $0x138] sm:$0xff] %vm662, %v563
  %703 = vst.msk [vmem:[%s5 + $0x140] sm:$0xff] %vm662, %v568
  %704 = vst.msk [vmem:[%s5 + $0x148] sm:$0xff] %vm662, %v571
  %705 = vst.msk [vmem:[%s5 + $0x150] sm:$0xff] %vm662, %v576
  %706 = vst.msk [vmem:[%s5 + $0x158] sm:$0xff] %vm662, %v579
  %707 = vst.msk [vmem:[%s5 + $0x160] sm:$0xff] %vm662, %v584
  %708 = vst.msk [vmem:[%s5 + $0x168] sm:$0xff] %vm662, %v587
  %709 = vst.msk [vmem:[%s5 + $0x170] sm:$0xff] %vm662, %v592
  %710 = vst.msk [vmem:[%s5 + $0x178] sm:$0xff] %vm662, %v595
  %711 = vst.msk [vmem:[%s5 + $0x180] sm:$0xff] %vm662, %v600
  %712 = vst.msk [vmem:[%s5 + $0x188] sm:$0xff] %vm662, %v603
  %713 = vst.msk [vmem:[%s5 + $0x190] sm:$0xff] %vm662, %v608
  %714 = vst.msk [vmem:[%s5 + $0x198] sm:$0xff] %vm662, %v611
  %715 = vst.msk [vmem:[%s5 + $0x1a0] sm:$0xff] %vm662, %v616
  %716 = vst.msk [vmem:[%s5 + $0x1a8] sm:$0xff] %vm662, %v619
  %717 = vst.msk [vmem:[%s5 + $0x1b0] sm:$0xff] %vm662, %v624
  %718 = vst.msk [vmem:[%s5 + $0x1b8] sm:$0xff] %vm662, %v627
  %719 = vst.msk [vmem:[%s5 + $0x1c0] sm:$0xff] %vm662, %v632
  %720 = vst.msk [vmem:[%s5 + $0x1c8] sm:$0xff] %vm662, %v635
  %721 = vst.msk [vmem:[%s5 + $0x1d0] sm:$0xff] %vm662, %v640
  %722 = vst.msk [vmem:[%s5 + $0x1d8] sm:$0xff] %vm662, %v643
  %723 = vst.msk [vmem:[%s5 + $0x1e0] sm:$0xff] %vm662, %v648
  %724 = vst.msk [vmem:[%s5 + $0x1e8] sm:$0xff] %vm662, %v651
  %725 = vst.msk [vmem:[%s5 + $0x1f0] sm:$0xff] %vm662, %v656
  %726 = vst.msk [vmem:[%s5 + $0x1f8] sm:$0xff] %vm662, %v659
  %791 = vrot.lane.b32.xlu0 %v408, 96
  %v792 = vpop.permute.xlu0 %791
  %793 = vrot.lane.b32.xlu0 %v411, 96
  %v794 = vpop.permute.xlu0 %793
  %795 = vrot.lane.b32.xlu0 %v416, 96
  %v796 = vpop.permute.xlu0 %795
  %797 = vrot.lane.b32.xlu0 %v419, 96
  %v798 = vpop.permute.xlu0 %797
  %799 = vrot.lane.b32.xlu0 %v424, 96
  %v800 = vpop.permute.xlu0 %799
  %801 = vrot.lane.b32.xlu0 %v427, 96
  %v802 = vpop.permute.xlu0 %801
  %803 = vrot.lane.b32.xlu0 %v432, 96
  %v804 = vpop.permute.xlu0 %803
  %805 = vrot.lane.b32.xlu0 %v435, 96
  %v806 = vpop.permute.xlu0 %805
  %807 = vrot.lane.b32.xlu0 %v440, 96
  %v808 = vpop.permute.xlu0 %807
  %809 = vrot.lane.b32.xlu0 %v443, 96
  %v810 = vpop.permute.xlu0 %809
  %811 = vrot.lane.b32.xlu0 %v448, 96
  %v812 = vpop.permute.xlu0 %811
  %813 = vrot.lane.b32.xlu0 %v451, 96
  %v814 = vpop.permute.xlu0 %813
  %815 = vrot.lane.b32.xlu0 %v456, 96
  %v816 = vpop.permute.xlu0 %815
  %817 = vrot.lane.b32.xlu0 %v459, 96
  %v818 = vpop.permute.xlu0 %817
  %819 = vrot.lane.b32.xlu0 %v464, 96
  %v820 = vpop.permute.xlu0 %819
  %821 = vrot.lane.b32.xlu0 %v467, 96
  %v822 = vpop.permute.xlu0 %821
  %823 = vrot.lane.b32.xlu0 %v472, 96
  %v824 = vpop.permute.xlu0 %823
  %825 = vrot.lane.b32.xlu0 %v475, 96
  %v826 = vpop.permute.xlu0 %825
  %827 = vrot.lane.b32.xlu0 %v480, 96
  %v828 = vpop.permute.xlu0 %827
  %829 = vrot.lane.b32.xlu0 %v483, 96
  %v830 = vpop.permute.xlu0 %829
  %831 = vrot.lane.b32.xlu0 %v488, 96
  %v832 = vpop.permute.xlu0 %831
  %833 = vrot.lane.b32.xlu0 %v491, 96
  %v834 = vpop.permute.xlu0 %833
  %835 = vrot.lane.b32.xlu0 %v496, 96
  %v836 = vpop.permute.xlu0 %835
  %837 = vrot.lane.b32.xlu0 %v499, 96
  %v838 = vpop.permute.xlu0 %837
  %839 = vrot.lane.b32.xlu0 %v504, 96
  %v840 = vpop.permute.xlu0 %839
  %841 = vrot.lane.b32.xlu0 %v507, 96
  %v842 = vpop.permute.xlu0 %841
  %843 = vrot.lane.b32.xlu0 %v512, 96
  %v844 = vpop.permute.xlu0 %843
  %845 = vrot.lane.b32.xlu0 %v515, 96
  %v846 = vpop.permute.xlu0 %845
  %847 = vrot.lane.b32.xlu0 %v520, 96
  %v848 = vpop.permute.xlu0 %847
  %849 = vrot.lane.b32.xlu0 %v523, 96
  %v850 = vpop.permute.xlu0 %849
  %851 = vrot.lane.b32.xlu0 %v528, 96
  %v852 = vpop.permute.xlu0 %851
  %853 = vrot.lane.b32.xlu0 %v531, 96
  %v854 = vpop.permute.xlu0 %853
  %855 = vrot.lane.b32.xlu0 %v536, 96
  %v856 = vpop.permute.xlu0 %855
  %857 = vrot.lane.b32.xlu0 %v539, 96
  %v858 = vpop.permute.xlu0 %857
  %859 = vrot.lane.b32.xlu0 %v544, 96
  %v860 = vpop.permute.xlu0 %859
  %861 = vrot.lane.b32.xlu0 %v547, 96
  %v862 = vpop.permute.xlu0 %861
  %863 = vrot.lane.b32.xlu0 %v552, 96
  %v864 = vpop.permute.xlu0 %863
  %865 = vrot.lane.b32.xlu0 %v555, 96
  %v866 = vpop.permute.xlu0 %865
  %867 = vrot.lane.b32.xlu0 %v560, 96
  %v868 = vpop.permute.xlu0 %867
  %869 = vrot.lane.b32.xlu0 %v563, 96
  %v870 = vpop.permute.xlu0 %869
  %871 = vrot.lane.b32.xlu0 %v568, 96
  %v872 = vpop.permute.xlu0 %871
  %873 = vrot.lane.b32.xlu0 %v571, 96
  %v874 = vpop.permute.xlu0 %873
  %875 = vrot.lane.b32.xlu0 %v576, 96
  %v876 = vpop.permute.xlu0 %875
  %877 = vrot.lane.b32.xlu0 %v579, 96
  %v878 = vpop.permute.xlu0 %877
  %879 = vrot.lane.b32.xlu0 %v584, 96
  %v880 = vpop.permute.xlu0 %879
  %881 = vrot.lane.b32.xlu0 %v587, 96
  %v882 = vpop.permute.xlu0 %881
  %883 = vrot.lane.b32.xlu0 %v592, 96
  %v884 = vpop.permute.xlu0 %883
  %885 = vrot.lane.b32.xlu0 %v595, 96
  %v886 = vpop.permute.xlu0 %885
  %887 = vrot.lane.b32.xlu0 %v600, 96
  %v888 = vpop.permute.xlu0 %887
  %889 = vrot.lane.b32.xlu0 %v603, 96
  %v890 = vpop.permute.xlu0 %889
  %891 = vrot.lane.b32.xlu0 %v608, 96
  %v892 = vpop.permute.xlu0 %891
  %893 = vrot.lane.b32.xlu0 %v611, 96
  %v894 = vpop.permute.xlu0 %893
  %895 = vrot.lane.b32.xlu0 %v616, 96
  %v896 = vpop.permute.xlu0 %895
  %897 = vrot.lane.b32.xlu0 %v619, 96
  %v898 = vpop.permute.xlu0 %897
  %899 = vrot.lane.b32.xlu0 %v624, 96
  %v900 = vpop.permute.xlu0 %899
  %901 = vrot.lane.b32.xlu0 %v627, 96
  %v902 = vpop.permute.xlu0 %901
  %903 = vrot.lane.b32.xlu0 %v632, 96
  %v904 = vpop.permute.xlu0 %903
  %905 = vrot.lane.b32.xlu0 %v635, 96
  %v906 = vpop.permute.xlu0 %905
  %907 = vrot.lane.b32.xlu0 %v640, 96
  %v908 = vpop.permute.xlu0 %907
  %909 = vrot.lane.b32.xlu0 %v643, 96
  %v910 = vpop.permute.xlu0 %909
  %911 = vrot.lane.b32.xlu0 %v648, 96
  %v912 = vpop.permute.xlu0 %911
  %913 = vrot.lane.b32.xlu0 %v651, 96
  %v914 = vpop.permute.xlu0 %913
  %915 = vrot.lane.b32.xlu0 %v656, 96
  %v916 = vpop.permute.xlu0 %915
  %917 = vrot.lane.b32.xlu0 %v659, 96
  %v918 = vpop.permute.xlu0 %917
  %983 = vst.msk [vmem:[%s6] sm:$0xff] %vm662, %v792
  %984 = vst.msk [vmem:[%s6 + $0x8] sm:$0xff] %vm662, %v794
  %985 = vst.msk [vmem:[%s6 + $0x10] sm:$0xff] %vm662, %v796
  %986 = vst.msk [vmem:[%s6 + $0x18] sm:$0xff] %vm662, %v798
  %987 = vst.msk [vmem:[%s6 + $0x20] sm:$0xff] %vm662, %v800
  %988 = vst.msk [vmem:[%s6 + $0x28] sm:$0xff] %vm662, %v802
  %989 = vst.msk [vmem:[%s6 + $0x30] sm:$0xff] %vm662, %v804
  %990 = vst.msk [vmem:[%s6 + $0x38] sm:$0xff] %vm662, %v806
  %991 = vst.msk [vmem:[%s6 + $0x40] sm:$0xff] %vm662, %v808
  %992 = vst.msk [vmem:[%s6 + $0x48] sm:$0xff] %vm662, %v810
  %993 = vst.msk [vmem:[%s6 + $0x50] sm:$0xff] %vm662, %v812
  %994 = vst.msk [vmem:[%s6 + $0x58] sm:$0xff] %vm662, %v814
  %995 = vst.msk [vmem:[%s6 + $0x60] sm:$0xff] %vm662, %v816
  %996 = vst.msk [vmem:[%s6 + $0x68] sm:$0xff] %vm662, %v818
  %997 = vst.msk [vmem:[%s6 + $0x70] sm:$0xff] %vm662, %v820
  %998 = vst.msk [vmem:[%s6 + $0x78] sm:$0xff] %vm662, %v822
  %999 = vst.msk [vmem:[%s6 + $0x80] sm:$0xff] %vm662, %v824
  %1000 = vst.msk [vmem:[%s6 + $0x88] sm:$0xff] %vm662, %v826
  %1001 = vst.msk [vmem:[%s6 + $0x90] sm:$0xff] %vm662, %v828
  %1002 = vst.msk [vmem:[%s6 + $0x98] sm:$0xff] %vm662, %v830
  %1003 = vst.msk [vmem:[%s6 + $0xa0] sm:$0xff] %vm662, %v832
  %1004 = vst.msk [vmem:[%s6 + $0xa8] sm:$0xff] %vm662, %v834
  %1005 = vst.msk [vmem:[%s6 + $0xb0] sm:$0xff] %vm662, %v836
  %1006 = vst.msk [vmem:[%s6 + $0xb8] sm:$0xff] %vm662, %v838
  %1007 = vst.msk [vmem:[%s6 + $0xc0] sm:$0xff] %vm662, %v840
  %1008 = vst.msk [vmem:[%s6 + $0xc8] sm:$0xff] %vm662, %v842
  %1009 = vst.msk [vmem:[%s6 + $0xd0] sm:$0xff] %vm662, %v844
  %1010 = vst.msk [vmem:[%s6 + $0xd8] sm:$0xff] %vm662, %v846
  %1011 = vst.msk [vmem:[%s6 + $0xe0] sm:$0xff] %vm662, %v848
  %1012 = vst.msk [vmem:[%s6 + $0xe8] sm:$0xff] %vm662, %v850
  %1013 = vst.msk [vmem:[%s6 + $0xf0] sm:$0xff] %vm662, %v852
  %1014 = vst.msk [vmem:[%s6 + $0xf8] sm:$0xff] %vm662, %v854
  %1015 = vst.msk [vmem:[%s6 + $0x100] sm:$0xff] %vm662, %v856
  %1016 = vst.msk [vmem:[%s6 + $0x108] sm:$0xff] %vm662, %v858
  %1017 = vst.msk [vmem:[%s6 + $0x110] sm:$0xff] %vm662, %v860
  %1018 = vst.msk [vmem:[%s6 + $0x118] sm:$0xff] %vm662, %v862
  %1019 = vst.msk [vmem:[%s6 + $0x120] sm:$0xff] %vm662, %v864
  %1020 = vst.msk [vmem:[%s6 + $0x128] sm:$0xff] %vm662, %v866
  %1021 = vst.msk [vmem:[%s6 + $0x130] sm:$0xff] %vm662, %v868
  %1022 = vst.msk [vmem:[%s6 + $0x138] sm:$0xff] %vm662, %v870
  %1023 = vst.msk [vmem:[%s6 + $0x140] sm:$0xff] %vm662, %v872
  %1024 = vst.msk [vmem:[%s6 + $0x148] sm:$0xff] %vm662, %v874
  %1025 = vst.msk [vmem:[%s6 + $0x150] sm:$0xff] %vm662, %v876
  %1026 = vst.msk [vmem:[%s6 + $0x158] sm:$0xff] %vm662, %v878
  %1027 = vst.msk [vmem:[%s6 + $0x160] sm:$0xff] %vm662, %v880
  %1028 = vst.msk [vmem:[%s6 + $0x168] sm:$0xff] %vm662, %v882
  %1029 = vst.msk [vmem:[%s6 + $0x170] sm:$0xff] %vm662, %v884
  %1030 = vst.msk [vmem:[%s6 + $0x178] sm:$0xff] %vm662, %v886
  %1031 = vst.msk [vmem:[%s6 + $0x180] sm:$0xff] %vm662, %v888
  %1032 = vst.msk [vmem:[%s6 + $0x188] sm:$0xff] %vm662, %v890
  %1033 = vst.msk [vmem:[%s6 + $0x190] sm:$0xff] %vm662, %v892
  %1034 = vst.msk [vmem:[%s6 + $0x198] sm:$0xff] %vm662, %v894
  %1035 = vst.msk [vmem:[%s6 + $0x1a0] sm:$0xff] %vm662, %v896
  %1036 = vst.msk [vmem:[%s6 + $0x1a8] sm:$0xff] %vm662, %v898
  %1037 = vst.msk [vmem:[%s6 + $0x1b0] sm:$0xff] %vm662, %v900
  %1038 = vst.msk [vmem:[%s6 + $0x1b8] sm:$0xff] %vm662, %v902
  %1039 = vst.msk [vmem:[%s6 + $0x1c0] sm:$0xff] %vm662, %v904
  %1040 = vst.msk [vmem:[%s6 + $0x1c8] sm:$0xff] %vm662, %v906
  %1041 = vst.msk [vmem:[%s6 + $0x1d0] sm:$0xff] %vm662, %v908
  %1042 = vst.msk [vmem:[%s6 + $0x1d8] sm:$0xff] %vm662, %v910
  %1043 = vst.msk [vmem:[%s6 + $0x1e0] sm:$0xff] %vm662, %v912
  %1044 = vst.msk [vmem:[%s6 + $0x1e8] sm:$0xff] %vm662, %v914
  %1045 = vst.msk [vmem:[%s6 + $0x1f0] sm:$0xff] %vm662, %v916
  %1046 = vst.msk [vmem:[%s6 + $0x1f8] sm:$0xff] %vm662, %v918
  // Predicated region
  $region22: #{tpu_custom_call.1} parent=0 // pred_check
    _
  $region23: #{tpu_custom_call.1} parent=0 // pred_check_branch
    %1048 = sbr.rel (0) target = $region25
  $region24: #{tpu_custom_call.1} parent=0 // pred_region
    _
  $region25: #{tpu_custom_call.1} parent=0 // pred_fallthru
    _
  // Predicated region
  $region26: #{tpu_custom_call.1} parent=0 // pred_check
    _
  $region27: #{tpu_custom_call.1} parent=0 // pred_check_branch
    %1050 = sbr.rel (0) target = $region29
  $region28: #{tpu_custom_call.1} parent=0 // pred_region
    _
  $region29: #{tpu_custom_call.1} parent=0 // pred_fallthru
    _
  // Predicated region
  $region30: #{tpu_custom_call.1} parent=0 // pred_check
    _
  $region31: #{tpu_custom_call.1} parent=0 // pred_check_branch
    %1052 = sbr.rel (0) target = $region33
  $region32: #{tpu_custom_call.1} parent=0 // pred_region
    _
  $region33: #{tpu_custom_call.1} parent=0 // pred_fallthru
    _
  // Predicated region
  $region34: #{tpu_custom_call.1} parent=0 // pred_check
    _
  $region35: #{tpu_custom_call.1} parent=0 // pred_check_branch
    %1054 = sbr.rel (0) target = $region37
  $region36: #{tpu_custom_call.1} parent=0 // pred_region
    _
  $region37: #{tpu_custom_call.1} parent=0 // pred_fallthru
    _

</llo_original>
